<compile_context>
chip_gen: v5e
topology: v5e:2x2
jax: 0.10.0
libtpu: 0.0.40
codegen_flags: <defaults>
</compile_context>

<pallas_src>
import functools

import jax
import jax.numpy as jnp
from jax.experimental import pallas as pl
from jax.experimental.pallas import tpu as pltpu


def _softmax_rows(x):
    m = jnp.max(x, axis=1, keepdims=True)
    e = jnp.exp(x - m)
    s = jnp.sum(e, axis=1, keepdims=True)
    # Exact reciprocal on the EUP: free slot, and rows sum to exactly ~1.
    return e * pl.reciprocal(s, approx=False)


def ensemble_kernel(men_ref, rules_ref, w_vn_ref,
                    w_out_r_ref, w_out_v_ref, w_out_n_ref, b_ref,
                    out_ref, *, nd):
    men = men_ref[...]                                            # (TB, D) bf16

    # One fused MXU push for both confidence branches: (TB, 2*Nd) f32 logits.
    logits = jnp.dot(men, w_vn_ref[...], preferred_element_type=jnp.float32)
    vsm = _softmax_rows(logits[:, :nd])                           # (TB, Nd) f32
    neural = _softmax_rows(logits[:, nd:])                        # (TB, Nd) f32

    odt = w_out_v_ref.dtype
    out = (jnp.dot(rules_ref[...], w_out_r_ref[...],
                   preferred_element_type=jnp.float32)
           + jnp.dot(vsm.astype(odt), w_out_v_ref[...],
                     preferred_element_type=jnp.float32)
           + jnp.dot(neural.astype(odt), w_out_n_ref[...],
                     preferred_element_type=jnp.float32)
           + b_ref[...])                                          # (TB, Nd) f32
    out_ref[...] = out.astype(out_ref.dtype)


def prepare_params(emb_table, poses, w_vsm, w_neural, w_out, b_out,
                   compute_dtype=jnp.bfloat16):
    """One-time (per-parameter-update) prep; all batch-independent.

    Weights arrive in PyTorch nn.Linear convention (out_features, in_features).
    """
    pos_pool = jnp.mean(emb_table[poses], axis=1)           # (Nd, D)
    w_comb = w_vsm.T @ pos_pool.T                            # (D, Nd) fused VSM
    w_vn = jnp.concatenate([w_comb, w_neural.T], axis=1)     # (D, 2*Nd)
    w_vn = w_vn.astype(compute_dtype)

    nd = w_out.shape[0]
    w_out_t = w_out.T                                        # (3*Nd, Nd)
    w_out_r = w_out_t[:nd].astype(compute_dtype)             # rules piece
    w_out_v = w_out_t[nd:2 * nd].astype(compute_dtype)       # vsm piece
    w_out_n = w_out_t[2 * nd:].astype(compute_dtype)         # neural piece
    b_out2d = b_out.reshape(1, -1).astype(jnp.float32)       # (1, Nd)
    return w_vn, w_out_r, w_out_v, w_out_n, b_out2d


def _pick_tb(b, tb_max=512):
    """Batch tile: big (amortize ~0.35us/step), multiple of 8, and for large B
    keep >=2 grid steps so v7x's two TensorCores both get work."""
    if b <= 16:
        return b                      # single full block (block dim == array dim)
    half = -(-b // 2)                 # ceil(B/2)
    half8 = ((half + 7) // 8) * 8
    return max(8, min(tb_max, half8))


def ensemble_forward(words, rules, emb_table,
                     w_vn, w_out_r, w_out_v, w_out_n, b_out2d, *, tb=None):
    """words: (B, L) int32; rules: (B, Nd) f32."""
    compute_dtype = w_vn.dtype
    # Embedding gather + mean pool stay in XLA (fuse; only (B, D) hits VMEM).
    men_pool = jnp.mean(emb_table[words], axis=1).astype(compute_dtype)  # (B, D)
    rules_c = rules.astype(compute_dtype)                                # (B, Nd)

    B, D = men_pool.shape
    nd = w_out_r.shape[1]
    if tb is None:
        tb = _pick_tb(B)
    grid = (pl.cdiv(B, tb),)          # no jnp.pad: ragged tail handled by Pallas

    full = lambda arr: pl.BlockSpec(arr.shape, lambda i: (0,) * arr.ndim)

    itemsize = lambda a: a.size * a.dtype.itemsize
    cost = pl.CostEstimate(
        flops=2 * B * D * (2 * nd) + 3 * 2 * B * nd * nd,
        transcendentals=2 * B * nd,
        bytes_accessed=(itemsize(men_pool) + itemsize(rules_c) + itemsize(w_vn)
                        + itemsize(w_out_r) + itemsize(w_out_v)
                        + itemsize(w_out_n) + itemsize(b_out2d)
                        + B * nd * 4))

    out = pl.pallas_call(
        functools.partial(ensemble_kernel, nd=nd),
        out_shape=jax.ShapeDtypeStruct((B, nd), jnp.float32),
        grid=grid,
        in_specs=[
            pl.BlockSpec((tb, D), lambda i: (i, 0)),      # mention pool tile
            pl.BlockSpec((tb, nd), lambda i: (i, 0)),     # rules tile
            full(w_vn),                                   # resident weights
            full(w_out_r),
            full(w_out_v),
            full(w_out_n),
            full(b_out2d),
        ],
        out_specs=pl.BlockSpec((tb, nd), lambda i: (i, 0)),
        compiler_params=pltpu.CompilerParams(
            dimension_semantics=("parallel",)),
        cost_estimate=cost,
    )(men_pool, rules_c, w_vn, w_out_r, w_out_v, w_out_n, b_out2d)
    return out


def ensemble_reference(words, rules, poses, emb_table,
                       w_vsm, w_neural, w_out, b_out):
    men_pool = jnp.mean(emb_table[words], axis=1)
    pos_pool = jnp.mean(emb_table[poses], axis=1)
    m_w = men_pool @ w_vsm.T
    vsm = jax.nn.softmax(m_w @ pos_pool.T, axis=1)
    neural = jax.nn.softmax(men_pool @ w_neural.T, axis=1)
    x = jnp.concatenate([rules, vsm, neural], axis=1)
    return x @ w_out.T + b_out


if __name__ == "__main__":
    # Small, deterministic problem sizes.
    VOCAB, D, ND = 50, 32, 16          # vocab, embedding_dim, dict_size
    B, L, LP = 2, 8, 6                 # batch, mention seq len, pos seq len

    key = jax.random.PRNGKey(0)
    (k_emb, k_words, k_poses, k_rules, k_neural, k_out_w, k_out_b,
     k_words2, k_rules2) = jax.random.split(key, 9)

    emb_table = jax.random.normal(k_emb, (VOCAB, D), dtype=jnp.float32) * 0.1
    words = jax.random.randint(k_words, (B, L), 0, VOCAB, dtype=jnp.int32)
    poses = jax.random.randint(k_poses, (ND, LP), 0, VOCAB, dtype=jnp.int32)
    rules = (jax.random.uniform(k_rules, (B, ND), dtype=jnp.float32) > 0.9
             ).astype(jnp.float32)

    # Parameters (PyTorch nn.Linear convention: (out_features, in_features)).
    w_vsm = jnp.eye(D, dtype=jnp.float32)                       # vsm_linear init
    w_neural = jax.random.normal(k_neural, (ND, D), jnp.float32) * 0.1
    w_out = jax.random.normal(k_out_w, (ND, 3 * ND), jnp.float32) * 0.1
    b_out = jax.random.normal(k_out_b, (ND,), jnp.float32) * 0.01

    # One-time weight prep (no per-call transposes / folds).
    w_vn, w_out_r, w_out_v, w_out_n, b_out2d = prepare_params(
        emb_table, poses, w_vsm, w_neural, w_out, b_out)

    fwd = jax.jit(ensemble_forward, static_argnames=("tb",))

    # --- small-batch check (single full block) ---
    out = fwd(words, rules, emb_table, w_vn, w_out_r, w_out_v, w_out_n, b_out2d)
    out = jax.block_until_ready(out)
    ref = ensemble_reference(words, rules, poses, emb_table,
                             w_vsm, w_neural, w_out, b_out)
    assert out.shape == (B, ND)
    assert jnp.allclose(out, ref, atol=1e-2, rtol=1e-2), "mismatch vs reference"

    # --- multi-step grid + ragged-tail check (no padding path) ---
    B2 = 24
    words2 = jax.random.randint(k_words2, (B2, L), 0, VOCAB, dtype=jnp.int32)
    rules2 = (jax.random.uniform(k_rules2, (B2, ND), dtype=jnp.float32) > 0.9
              ).astype(jnp.float32)
    out2 = jax.block_until_ready(
        fwd(words2, rules2, emb_table, w_vn, w_out_r, w_out_v, w_out_n, b_out2d))
    ref2 = ensemble_reference(words2, rules2, poses, emb_table,
                              w_vsm, w_neural, w_out, b_out)
    assert out2.shape == (B2, ND)
    assert jnp.allclose(out2, ref2, atol=1e-2, rtol=1e-2), "mismatch (ragged)"

    print("KERNEL_OK")
</pallas_src>

<mosaic_0001>
module attributes {stable_mosaic.version = 11 : i64} {
  func.func @ensemble_kernel(%arg0: i32, %arg1: memref<2x32xbf16, #tpu.memory_space<vmem>>, %arg2: memref<2x16xbf16, #tpu.memory_space<vmem>>, %arg3: memref<32x32xbf16, #tpu.memory_space<vmem>>, %arg4: memref<16x16xbf16, #tpu.memory_space<vmem>>, %arg5: memref<16x16xbf16, #tpu.memory_space<vmem>>, %arg6: memref<16x16xbf16, #tpu.memory_space<vmem>>, %arg7: memref<1x16xf32, #tpu.memory_space<vmem>>, %arg8: memref<2x16xf32, #tpu.memory_space<vmem>>) attributes {dimension_semantics = [#tpu.dimension_semantics<parallel>], iteration_bounds = array<i64: 1>, scalar_prefetch = 0 : i64, scratch_operands = 0 : i64, tpu.core_type = #tpu.core_type<tc>, window_params = [{transform_indices = @transform_0, window_bounds = array<i64: 2, 32>}, {transform_indices = @transform_1, window_bounds = array<i64: 2, 16>}, {pipeline_mode = #tpu.pipeline_mode<synchronous>, transform_indices = @transform_2, window_bounds = array<i64: 32, 32>}, {pipeline_mode = #tpu.pipeline_mode<synchronous>, transform_indices = @transform_3, window_bounds = array<i64: 16, 16>}, {pipeline_mode = #tpu.pipeline_mode<synchronous>, transform_indices = @transform_4, window_bounds = array<i64: 16, 16>}, {pipeline_mode = #tpu.pipeline_mode<synchronous>, transform_indices = @transform_5, window_bounds = array<i64: 16, 16>}, {pipeline_mode = #tpu.pipeline_mode<synchronous>, transform_indices = @transform_6, window_bounds = array<i64: 1, 16>}, {transform_indices = @transform_7, window_bounds = array<i64: 2, 16>}]} {
    %c0 = arith.constant 0 : index
    %c0_0 = arith.constant 0 : index
    %0 = vector.load %arg1[%c0, %c0_0] : memref<2x32xbf16, #tpu.memory_space<vmem>>, vector<2x32xbf16>
    %c0_1 = arith.constant 0 : index
    %c0_2 = arith.constant 0 : index
    %1 = vector.load %arg3[%c0_1, %c0_2] : memref<32x32xbf16, #tpu.memory_space<vmem>>, vector<32x32xbf16>
    %cst = arith.constant dense<0.000000e+00> : vector<2x32xf32>
    %2 = tpu.matmul %0, %1, %cst {dimension_numbers = #tpu.dot_dimension_numbers<[1], [0], [0], [1], [0, 0, 1, 1], [], []>} : vector<2x32xbf16>, vector<32x32xbf16>, vector<2x32xf32> -> vector<2x32xf32>
    %3 = vector.extract_strided_slice %2 {offsets = [0, 0], sizes = [2, 16], strides = [1, 1]} : vector<2x32xf32> to vector<2x16xf32>
    %cst_3 = arith.constant dense<0xFF800000> : vector<2xf32>
    %4 = vector.multi_reduction <maximumf>, %3, %cst_3 [1] : vector<2x16xf32> to vector<2xf32>
    %5 = vector.shape_cast %4 : vector<2xf32> to vector<2x1xf32>
    %6 = vector.broadcast %5 : vector<2x1xf32> to vector<2x16xf32>
    %7 = arith.subf %3, %6 : vector<2x16xf32>
    %8 = math.exp %7 : vector<2x16xf32>
    %cst_4 = arith.constant dense<0.000000e+00> : vector<2xf32>
    %9 = vector.multi_reduction <add>, %8, %cst_4 [1] : vector<2x16xf32> to vector<2xf32>
    %10 = vector.shape_cast %9 : vector<2xf32> to vector<2x1xf32>
    %11 = tpu.reciprocal %10 : vector<2x1xf32> -> vector<2x1xf32>
    %12 = vector.broadcast %11 : vector<2x1xf32> to vector<2x16xf32>
    %13 = arith.mulf %8, %12 : vector<2x16xf32>
    %14 = vector.extract_strided_slice %2 {offsets = [0, 16], sizes = [2, 16], strides = [1, 1]} : vector<2x32xf32> to vector<2x16xf32>
    %cst_5 = arith.constant dense<0xFF800000> : vector<2xf32>
    %15 = vector.multi_reduction <maximumf>, %14, %cst_5 [1] : vector<2x16xf32> to vector<2xf32>
    %16 = vector.shape_cast %15 : vector<2xf32> to vector<2x1xf32>
    %17 = vector.broadcast %16 : vector<2x1xf32> to vector<2x16xf32>
    %18 = arith.subf %14, %17 : vector<2x16xf32>
    %19 = math.exp %18 : vector<2x16xf32>
    %cst_6 = arith.constant dense<0.000000e+00> : vector<2xf32>
    %20 = vector.multi_reduction <add>, %19, %cst_6 [1] : vector<2x16xf32> to vector<2xf32>
    %21 = vector.shape_cast %20 : vector<2xf32> to vector<2x1xf32>
    %22 = tpu.reciprocal %21 : vector<2x1xf32> -> vector<2x1xf32>
    %23 = vector.broadcast %22 : vector<2x1xf32> to vector<2x16xf32>
    %24 = arith.mulf %19, %23 : vector<2x16xf32>
    %c0_7 = arith.constant 0 : index
    %c0_8 = arith.constant 0 : index
    %25 = vector.load %arg2[%c0_7, %c0_8] : memref<2x16xbf16, #tpu.memory_space<vmem>>, vector<2x16xbf16>
    %c0_9 = arith.constant 0 : index
    %c0_10 = arith.constant 0 : index
    %26 = vector.load %arg4[%c0_9, %c0_10] : memref<16x16xbf16, #tpu.memory_space<vmem>>, vector<16x16xbf16>
    %cst_11 = arith.constant dense<0.000000e+00> : vector<2x16xf32>
    %27 = tpu.matmul %25, %26, %cst_11 {dimension_numbers = #tpu.dot_dimension_numbers<[1], [0], [0], [1], [0, 0, 1, 1], [], []>} : vector<2x16xbf16>, vector<16x16xbf16>, vector<2x16xf32> -> vector<2x16xf32>
    %28 = arith.truncf %13 : vector<2x16xf32> to vector<2x16xbf16>
    %c0_12 = arith.constant 0 : index
    %c0_13 = arith.constant 0 : index
    %29 = vector.load %arg5[%c0_12, %c0_13] : memref<16x16xbf16, #tpu.memory_space<vmem>>, vector<16x16xbf16>
    %cst_14 = arith.constant dense<0.000000e+00> : vector<2x16xf32>
    %30 = tpu.matmul %28, %29, %cst_14 {dimension_numbers = #tpu.dot_dimension_numbers<[1], [0], [0], [1], [0, 0, 1, 1], [], []>} : vector<2x16xbf16>, vector<16x16xbf16>, vector<2x16xf32> -> vector<2x16xf32>
    %31 = arith.addf %27, %30 : vector<2x16xf32>
    %32 = arith.truncf %24 : vector<2x16xf32> to vector<2x16xbf16>
    %c0_15 = arith.constant 0 : index
    %c0_16 = arith.constant 0 : index
    %33 = vector.load %arg6[%c0_15, %c0_16] : memref<16x16xbf16, #tpu.memory_space<vmem>>, vector<16x16xbf16>
    %cst_17 = arith.constant dense<0.000000e+00> : vector<2x16xf32>
    %34 = tpu.matmul %32, %33, %cst_17 {dimension_numbers = #tpu.dot_dimension_numbers<[1], [0], [0], [1], [0, 0, 1, 1], [], []>} : vector<2x16xbf16>, vector<16x16xbf16>, vector<2x16xf32> -> vector<2x16xf32>
    %35 = arith.addf %31, %34 : vector<2x16xf32>
    %c0_18 = arith.constant 0 : index
    %c0_19 = arith.constant 0 : index
    %36 = vector.load %arg7[%c0_18, %c0_19] : memref<1x16xf32, #tpu.memory_space<vmem>>, vector<1x16xf32>
    %37 = vector.broadcast %36 : vector<1x16xf32> to vector<2x16xf32>
    %38 = arith.addf %35, %37 : vector<2x16xf32>
    %c0_20 = arith.constant 0 : index
    %c0_21 = arith.constant 0 : index
    %39 = vector.load %arg8[%c0_20, %c0_21] : memref<2x16xf32, #tpu.memory_space<vmem>>, vector<2x16xf32>
    tpu.vector_store %arg8[%c0_20, %c0_21], %38 {strides = array<i32>} : memref<2x16xf32, #tpu.memory_space<vmem>>, vector<2x16xf32>,
    return
  }
  func.func @transform_0(%arg0: i32) -> (i32, i32) {
    %c0_i32 = arith.constant 0 : i32
    %c0_i32_0 = arith.constant 0 : i32
    return %arg0, %c0_i32 : i32, i32
  }
  func.func @transform_1(%arg0: i32) -> (i32, i32) {
    %c0_i32 = arith.constant 0 : i32
    %c0_i32_0 = arith.constant 0 : i32
    return %arg0, %c0_i32 : i32, i32
  }
  func.func @transform_2(%arg0: i32) -> (i32, i32) {
    %c0_i32 = arith.constant 0 : i32
    %c0_i32_0 = arith.constant 0 : i32
    %c0_i32_1 = arith.constant 0 : i32
    return %c0_i32, %c0_i32_0 : i32, i32
  }
  func.func @transform_3(%arg0: i32) -> (i32, i32) {
    %c0_i32 = arith.constant 0 : i32
    %c0_i32_0 = arith.constant 0 : i32
    %c0_i32_1 = arith.constant 0 : i32
    return %c0_i32, %c0_i32_0 : i32, i32
  }
  func.func @transform_4(%arg0: i32) -> (i32, i32) {
    %c0_i32 = arith.constant 0 : i32
    %c0_i32_0 = arith.constant 0 : i32
    %c0_i32_1 = arith.constant 0 : i32
    return %c0_i32, %c0_i32_0 : i32, i32
  }
  func.func @transform_5(%arg0: i32) -> (i32, i32) {
    %c0_i32 = arith.constant 0 : i32
    %c0_i32_0 = arith.constant 0 : i32
    %c0_i32_1 = arith.constant 0 : i32
    return %c0_i32, %c0_i32_0 : i32, i32
  }
  func.func @transform_6(%arg0: i32) -> (i32, i32) {
    %c0_i32 = arith.constant 0 : i32
    %c0_i32_0 = arith.constant 0 : i32
    %c0_i32_1 = arith.constant 0 : i32
    return %c0_i32, %c0_i32_0 : i32, i32
  }
  func.func @transform_7(%arg0: i32) -> (i32, i32) {
    %c0_i32 = arith.constant 0 : i32
    %c0_i32_0 = arith.constant 0 : i32
    return %arg0, %c0_i32 : i32, i32
  }
}

</mosaic_0001>

<llo_original>
// kernel: ensemble_forward.1
$region0: #{ensemble_forward.1}
  #allocation0 [shape = 'u32[]', space=smem, size = 0x4, offset = 0x4, fixed_abs, tag = 'smem constant byte address 0x4 - core index']
  #allocation1 [shape = 'u32[72,128]{1,0:T(1,128)}', space=vmem, size = 0x9000, scoped, tag = 'internal scratch']
  %s0 = inlined_call_operand.vmem [shape: bf16[2,32], index: 0, kind: input, shape index: {}]
  %s1 = inlined_call_operand.vmem [shape: bf16[2,16], index: 1, kind: input, shape index: {}]
  %s2 = inlined_call_operand.vmem [shape: bf16[32,32], index: 2, kind: input, shape index: {}]
  %s3 = inlined_call_operand.vmem [shape: bf16[16,16], index: 3, kind: input, shape index: {}]
  %s4 = inlined_call_operand.vmem [shape: bf16[16,16], index: 4, kind: input, shape index: {}]
  %s5 = inlined_call_operand.vmem [shape: bf16[16,16], index: 5, kind: input, shape index: {}]
  %s6 = inlined_call_operand.vmem [shape: f32[1,16], index: 6, kind: input, shape index: {}]
  %s7 = inlined_call_operand.hbm [shape: f32[2,16], index: 7, kind: output, shape index: {}]
  %s8 = sld [smem:[#allocation0]]
  $region38: #{ensemble_forward.1} parent=0
    _
  %s10 = ssub.s32 1, %s8
  %s11 = scalar_select 0, %s10, %s8
  $region1: #{ensemble_forward.1} parent=0
    #allocation2 [shape = 'u8[1024]{0}', space=vmem, size = 0x400, scoped, tag = 'output window, operand 0, single buffered']
    #allocation3 [shape = 's32[1]{0}', space=sflag, size = 0x4, scoped, tag = 'scoped memory for ensemble_forward.1']
    %12 = vsyncpa [#allocation3], 0
    // Predicated region
    $region2: #{ensemble_forward.1} parent=1 // pred_check
      _
    $region3: #{ensemble_forward.1} parent=1 // pred_check_branch
      %14 = sbr.rel (0) target = $region5
    $region4: #{ensemble_forward.1} parent=1 // pred_region
      _
    $region5: #{ensemble_forward.1} parent=1 // pred_fallthru
      _
    // Predicated region
    $region6: #{ensemble_forward.1} parent=1 // pred_check
      _
    $region7: #{ensemble_forward.1} parent=1 // pred_check_branch
      %16 = sbr.rel (0) target = $region9
    $region8: #{ensemble_forward.1} parent=1 // pred_region
      _
    $region9: #{ensemble_forward.1} parent=1 // pred_fallthru
      _
    // Predicated region
    $region10: #{ensemble_forward.1} parent=1 // pred_check
      _
    $region11: #{ensemble_forward.1} parent=1 // pred_check_branch
      %18 = sbr.rel (0) target = $region13
    $region12: #{ensemble_forward.1} parent=1 // pred_region
      _
    $region13: #{ensemble_forward.1} parent=1 // pred_fallthru
      _
    // Predicated region
    $region14: #{ensemble_forward.1} parent=1 // pred_check
      _
    $region15: #{ensemble_forward.1} parent=1 // pred_check_branch
      %20 = sbr.rel (0) target = $region17
    $region16: #{ensemble_forward.1} parent=1 // pred_region
      _
    $region17: #{ensemble_forward.1} parent=1 // pred_fallthru
      _
    // Predicated region
    $region18: #{ensemble_forward.1} parent=1 // pred_check
      _
    $region19: #{ensemble_forward.1} parent=1 // pred_check_branch
      %22 = sbr.rel (0) target = $region21
    $region20: #{ensemble_forward.1} parent=1 // pred_region
      _
    $region21: #{ensemble_forward.1} parent=1 // pred_fallthru
      _
    // Predicated region
    $region22: #{ensemble_forward.1} parent=1 // pred_check
      _
    $region23: #{ensemble_forward.1} parent=1 // pred_check_branch
      %24 = sbr.rel (0) target = $region25
    $region24: #{ensemble_forward.1} parent=1 // pred_region
      _
    $region25: #{ensemble_forward.1} parent=1 // pred_fallthru
      _
    // Predicated region
    $region26: #{ensemble_forward.1} parent=1 // pred_check
      _
    $region27: #{ensemble_forward.1} parent=1 // pred_check_branch
      %26 = sbr.rel (0) target = $region29
    $region28: #{ensemble_forward.1} parent=1 // pred_region
      _
    $region29: #{ensemble_forward.1} parent=1 // pred_fallthru
      _
    %v28 = vld [vmem:[%s0] sm:$0x1]
    %v29 = vld [vmem:[%s2] sm:$0xf]
    %v30 = vld [vmem:[%s2 + $0x4] sm:$0xf]
    %v31 = vld [vmem:[%s2 + $0x8] sm:$0xf]
    %v32 = vld [vmem:[%s2 + $0xc] sm:$0xf]
    %v37 = vunpack.c.l.b16 %v29
    %v38 = vunpack.c.l.b16 %v30
    %v39 = vunpack.c.l.b16 %v31
    %v40 = vunpack.c.l.b16 %v32
    %v41 = vpack.c.b16 %v38, %v37
    %v42 = vpack.c.b16 %v40, %v39
    %vm45 = vcmask 261120
    %v47 = vsel %vm45, %v28, 0
    %49 = vmatpush.bf16.msra.mxu0 0
    %50 = vmatpush.bf16.msra.mxu0 0
    %51 = vmatpush.bf16.msra.mxu0 0
    %52 = vmatpush.bf16.msra.mxu0 0
    %53 = vmatpush.bf16.msra.mxu0 0
    %54 = vmatpush.bf16.msra.mxu0 0
    %55 = vmatpush.bf16.msra.mxu0 %v42
    %56 = vmatpush.bf16.msra.mxu0 %v41
    %57 = vmatmul.bf16.gmra.mxu0 %v47
    %v58 = vpop.f32.mrf.mxu0
    %v59 = vadd.f32 0.0, %v58
    %v60 = vpop.f32.mrf.mxu0
    %61 = vdwg.mxu0
    %vm62 = vcmask 123904
    %v63 = vsel %vm62, %v59, -inf
    %64 = vmax.xlane.f32.xlu0 %v63
    %v65 = vpop.xlane.xlu0 %64
    %v66 = vsub.f32 %v59, %v65
    %v67 = vmul.f32 %v66, 1.442695
    %v68 = vpow.pop %v67
    %v69 = vsel %vm62, %v68, 0.0
    %70 = vadd.xlane.f32.xlu0 %v69
    %v71 = vpop.xlane.xlu0 %70
    %v72 = vrcp.pop %v71
    %v73 = vmul.f32 %v71, %v72
    %v74 = vsub.f32 1.0, %v73
    %v75 = vmul.f32 %v72, %v74
    %v76 = vadd.f32 %v72, %v75
    %vm77 = vweird.f32 %v71
    %vm78 = vweird.f32 %v72
    %vm79 = vmor %vm77, %vm78
    %v80 = vsel %vm79, %v72, %v76
    %v81 = vand.u32 2147483647, %v71
    %vm82 = vcmp.eq.f32.partialorder %v81, 8.507059e+37
    %v83 = vand.u32 %v71, 2147483648
    %v84 = vor.u32 1.1754944e-38, %v83
    %v85 = vsel %vm82, %v84, %v80
    %v86 = vmul.f32 %v68, %v85
    %vm87 = vcmask 255104
    %v88 = vsel %vm87, %v59, -inf
    %89 = vmax.xlane.f32.xlu0 %v88
    %v90 = vpop.xlane.xlu0 %89
    %v91 = vsub.f32 %v59, %v90
    %v92 = vmul.f32 %v91, 1.442695
    %v93 = vpow.pop %v92
    %95 = vrot.lane.b32.xlu0 %v93, 112
    %v96 = vpop.permute.xlu0 %95
    %v98 = vsel %vm62, %v96, 0.0
    %99 = vadd.xlane.f32.xlu0 %v98
    %v100 = vpop.xlane.xlu0 %99
    %v101 = vrcp.pop %v100
    %v102 = vmul.f32 %v100, %v101
    %v103 = vsub.f32 1.0, %v102
    %v104 = vmul.f32 %v101, %v103
    %v105 = vadd.f32 %v101, %v104
    %vm106 = vweird.f32 %v100
    %vm107 = vweird.f32 %v101
    %vm108 = vmor %vm106, %vm107
    %v109 = vsel %vm108, %v101, %v105
    %v110 = vand.u32 2147483647, %v100
    %vm111 = vcmp.eq.f32.partialorder %v110, 8.507059e+37
    %v112 = vand.u32 %v100, 2147483648
    %v113 = vor.u32 1.1754944e-38, %v112
    %v114 = vsel %vm111, %v113, %v109
    %v115 = vmul.f32 %v93, %v114
    %v116 = vld [vmem:[%s1] sm:$0x1]
    %v117 = vld [vmem:[%s3] sm:$0xf]
    %v118 = vld [vmem:[%s3 + $0x4] sm:$0xf]
    %v119 = vpack.c.bf16 %v86, %v86
    %v120 = vld [vmem:[%s4] sm:$0xf]
    %v121 = vld [vmem:[%s4 + $0x4] sm:$0xf]
    %v124 = vunpack.c.l.b16 %v120
    %v125 = vunpack.c.l.b16 %v121
    %v126 = vpack.c.b16 %v125, %v124
    %vm128 = vcmask 130048
    %v130 = vsel %vm128, %v119, 0
    %132 = vmatpush.bf16.msra.mxu0 0
    %133 = vmatpush.bf16.msra.mxu0 0
    %134 = vmatpush.bf16.msra.mxu0 0
    %135 = vmatpush.bf16.msra.mxu0 0
    %136 = vmatpush.bf16.msra.mxu0 0
    %137 = vmatpush.bf16.msra.mxu0 0
    %138 = vmatpush.bf16.msra.mxu0 0
    %139 = vmatpush.bf16.msra.mxu0 %v126
    %140 = vmatmul.bf16.gmra.mxu0 %v130
    %v141 = vpop.f32.mrf.mxu0
    %v142 = vadd.f32 0.0, %v141
    %v143 = vpop.f32.mrf.mxu0
    %144 = vdwg.mxu0
    %v147 = vunpack.c.l.b16 %v117
    %v148 = vunpack.c.l.b16 %v118
    %v149 = vpack.c.b16 %v148, %v147
    %v152 = vsel %vm128, %v116, 0
    %154 = vmatpush.bf16.msra.mxu0 0
    %155 = vmatpush.bf16.msra.mxu0 0
    %156 = vmatpush.bf16.msra.mxu0 0
    %157 = vmatpush.bf16.msra.mxu0 0
    %158 = vmatpush.bf16.msra.mxu0 0
    %159 = vmatpush.bf16.msra.mxu0 0
    %160 = vmatpush.bf16.msra.mxu0 0
    %161 = vmatpush.bf16.msra.mxu0 %v149
    %162 = vmatmul.bf16.gmra.mxu0 %v152
    %v163 = vpop.f32.mrf.mxu0
    %v164 = vadd.f32 %v142, %v163
    %v165 = vpop.f32.mrf.mxu0
    %166 = vdwg.mxu0
    %v167 = vpack.c.bf16 %v115, %v115
    %v168 = vld [vmem:[%s5] sm:$0xf]
    %v169 = vld [vmem:[%s5 + $0x4] sm:$0xf]
    %171 = vrot.lane.b32.xlu0 %v167, 112
    %v172 = vpop.permute.xlu0 %171
    %v175 = vunpack.c.l.b16 %v168
    %v176 = vunpack.c.l.b16 %v169
    %v177 = vpack.c.b16 %v176, %v175
    %v180 = vsel %vm128, %v172, 0
    %182 = vmatpush.bf16.msra.mxu0 0
    %183 = vmatpush.bf16.msra.mxu0 0
    %184 = vmatpush.bf16.msra.mxu0 0
    %185 = vmatpush.bf16.msra.mxu0 0
    %186 = vmatpush.bf16.msra.mxu0 0
    %187 = vmatpush.bf16.msra.mxu0 0
    %188 = vmatpush.bf16.msra.mxu0 0
    %189 = vmatpush.bf16.msra.mxu0 %v177
    %190 = vmatmul.bf16.gmra.mxu0 %v180
    %v191 = vpop.f32.mrf.mxu0
    %v192 = vadd.f32 0.0, %v191
    %v193 = vpop.f32.mrf.mxu0
    %194 = vdwg.mxu0
    %v195 = vadd.f32 %v164, %v192
    %v196 = vld [vmem:[%s6] sm:$0x1]
    %v198 = vperm.slane %v196, 0
    %v200 = vadd.f32 %v195, %v198
    %201 = vst.msk [vmem:[#allocation2] sm:$0x3] %vm62, %v200
    // Predicated region
    $region30: #{ensemble_forward.1} parent=1 // pred_check
      _
    $region31: #{ensemble_forward.1} parent=1 // pred_check_branch
      %203 = sbr.rel (0) target = $region33
    $region32: #{ensemble_forward.1} parent=1 // pred_region
      %205 = vsyncadd [#allocation3], 0
      %s207 = sshll.u32 [#allocation2], 4
      %s208 = int_to_ptr.vmem [resolvable:$true] %s207
      %s209 = sshll.u32 %s7, 4
      %s210 = int_to_ptr.hbm [resolvable:$true] %s209
      %212 = dma.vmem_to_hbm [thread:$0]  %s208, 32, %s210, [#allocation3]
    $region33: #{ensemble_forward.1} parent=1 // pred_fallthru
      _
    // Predicated region
    $region34: #{ensemble_forward.1} parent=1 // pred_check
      _
    $region35: #{ensemble_forward.1} parent=1 // pred_check_branch
      %214 = sbr.rel (0) target = $region37
    $region36: #{ensemble_forward.1} parent=1 // pred_region
      %216 = dma.done [#allocation3], 32
    $region37: #{ensemble_forward.1} parent=1 // pred_fallthru
      _
    %217 = vsyncpa [#allocation3], 1

</llo_original>
